<compile_context>
chip_gen: v5e
topology: v5e:2x2
jax: 0.10.0
libtpu: 0.0.40
codegen_flags: <defaults>
</compile_context>

<pallas_src>
import jax
import jax.numpy as jnp
import numpy as np
from jax.experimental import pallas as pl
from jax.experimental.pallas import tpu as pltpu


def _vmem_limit_bytes():
    """~75% of physical VMEM, clipped: leaves compiler headroom on v7x."""
    try:
        cap = pltpu.get_tpu_info().vmem_capacity_bytes
    except Exception:
        cap = 64 * 1024 * 1024
    return max(32 * 1024 * 1024, min(int(cap * 3 // 4), 100 * 1024 * 1024))


def _dgi_proj_kernel(x_ref, xt_ref, wT_ref, out_ref):
    """out[:, :Hp] = x @ W.T ; out[:, Hp:] = x_tilde @ W.T (no activation)."""
    wT = wT_ref[...]                                     # [F, Hp]
    hp = wT.shape[1]
    xw = jnp.dot(x_ref[...], wT, preferred_element_type=jnp.float32)
    xtw = jnp.dot(xt_ref[...], wT, preferred_element_type=jnp.float32)
    out_ref[:, 0:hp] = xw.astype(out_ref.dtype)
    out_ref[:, hp:2 * hp] = xtw.astype(out_ref.dtype)


def _dgi_main_kernel(xw_hbm, adj_ref, wbT_ref, sc_ref, dp_ref, dn_ref,
                     xw_vmem, hcat_scr, colsum_scr, dma_sem):
    i = pl.program_id(0)
    last = pl.num_programs(0) - 1
    tm = adj_ref.shape[0]                                # adj rows this step
    hp = wbT_ref.shape[0]                                # padded hidden dim

    alpha = sc_ref[0]                                    # shared PReLU slope
    inv_n = sc_ref[1]                                    # 1 / true N

    # One-time: bring the projected features [Np, 2Hp] into VMEM
    # (single-buffered resident operand) and zero the readout accumulator.
    @pl.when(i == 0)
    def _():
        cp = pltpu.make_async_copy(xw_hbm, xw_vmem, dma_sem)
        cp.start()
        cp.wait()
        colsum_scr[...] = jnp.zeros_like(colsum_scr)

    # Fused neighborhood aggregation for both views: one MXU matmul per tile.
    z = jnp.dot(adj_ref[...], xw_vmem[...],
                preferred_element_type=jnp.float32)      # [tm, 2Hp] f32
    z = jnp.where(z >= 0.0, z, alpha * z)                # shared PReLU

    row0 = pl.multiple_of(i * tm, tm)
    hcat_scr[pl.ds(row0, tm), :] = z.astype(hcat_scr.dtype)   # [h | h_tilde]

    # Readout partial sum (view 1 half only), accumulated while the loop is
    # MXU/DMA-bound; avoids re-reading the whole [N, H] scratch later.
    colsum_scr[...] += jnp.sum(z[:, 0:hp], axis=0, keepdims=True)

    # Epilogue: readout + bilinear discriminator, once, on the last tile.
    @pl.when(i == last)
    def _():
        s = jax.nn.sigmoid(colsum_scr[...] * inv_n)      # [1, Hp]
        u = jnp.dot(s, wbT_ref[...],
                    preferred_element_type=jnp.float32)  # [1, Hp] = s @ Wb.T
        u = u.astype(hcat_scr.dtype)
        # Contract the lane (H) axis of h / h_tilde as the MXU LHS; only the
        # tiny [1, Hp] vector gets relayouted, never the [N, H] scratch.
        contract = (((1,), (1,)), ((), ()))
        dp = jax.lax.dot_general(hcat_scr[:, 0:hp], u, contract,
                                 preferred_element_type=jnp.float32)  # [Np,1]
        dn = jax.lax.dot_general(hcat_scr[:, hp:2 * hp], u, contract,
                                 preferred_element_type=jnp.float32)  # [Np,1]
        dp_ref[...] = dp
        dn_ref[...] = dn


def dgi_forward(x, x_tilde, adj, W, Wb, alpha, *, row_tile=512,
                compute_dtype=jnp.bfloat16):
    """DGI forward. Returns [1, 2N] = concat(positive scores, negative scores)."""
    N, F = x.shape
    H = W.shape[0]
    f32 = jnp.float32
    cd = jnp.dtype(compute_dtype)
    mult = 16 if cd.itemsize < 4 else 8                  # sublane packing

    # Hidden dim padded to a lane-dense multiple of 128.  Zero padding is
    # exact: padded h columns are 0 and padded Wb rows/cols are 0, so padded
    # entries never contribute to dp/dn.
    hp = ((H + 127) // 128) * 128
    # Row tile: multiple of `mult`; N padded to a tile multiple so the grid
    # always divides evenly (no whole-adjacency VMEM-cliff fallback).
    if N <= row_tile:
        tm = ((N + mult - 1) // mult) * mult
    else:
        tm = max(mult, (row_tile // mult) * mult)
    n_pad = ((N + tm - 1) // tm) * tm
    num_tiles = n_pad // tm
    pad_rows = n_pad - N

    # Wrapper-side padding / casts / transposes (cheap layout work).
    x_p = jnp.pad(jnp.asarray(x, f32), ((0, pad_rows), (0, 0))).astype(cd)
    xt_p = jnp.pad(jnp.asarray(x_tilde, f32), ((0, pad_rows), (0, 0))).astype(cd)
    adj_p = jnp.pad(jnp.asarray(adj, f32),
                    ((0, pad_rows), (0, pad_rows))).astype(cd)
    wT_p = jnp.pad(jnp.asarray(W, f32).T, ((0, 0), (0, hp - H))).astype(cd)  # [F,Hp]
    wbT_p = jnp.pad(jnp.asarray(Wb, f32).T, ((0, hp - H), (0, hp - H)))      # [Hp,Hp]
    scalars = jnp.array([alpha, 1.0 / N], dtype=f32)     # PReLU slope, 1/N

    vmem_limit = _vmem_limit_bytes()

    # ---- kernel 1: feature projection  xw = [x @ W.T | x_tilde @ W.T] ------
    xw = pl.pallas_call(
        _dgi_proj_kernel,
        out_shape=jax.ShapeDtypeStruct((n_pad, 2 * hp), cd),
        grid_spec=pltpu.PrefetchScalarGridSpec(
            num_scalar_prefetch=0,
            grid=(num_tiles,),
            in_specs=[
                pl.BlockSpec((tm, F), lambda i: (i, 0)),          # x rows
                pl.BlockSpec((tm, F), lambda i: (i, 0)),          # x_tilde rows
                pl.BlockSpec((F, hp), lambda i: (0, 0)),          # W^T (resident)
            ],
            out_specs=pl.BlockSpec((tm, 2 * hp), lambda i: (i, 0)),
        ),
        compiler_params=pltpu.CompilerParams(
            dimension_semantics=("parallel",),
            vmem_limit_bytes=vmem_limit,
        ),
    )(x_p, xt_p, wT_p)

    # ---- kernel 2: aggregation + PReLU + readout + discriminator -----------
    dp, dn = pl.pallas_call(
        _dgi_main_kernel,
        out_shape=(jax.ShapeDtypeStruct((n_pad, 1), f32),
                   jax.ShapeDtypeStruct((n_pad, 1), f32)),
        grid_spec=pltpu.PrefetchScalarGridSpec(
            num_scalar_prefetch=0,
            grid=(num_tiles,),
            in_specs=[
                pl.BlockSpec(memory_space=pl.ANY),                 # xw (HBM)
                pl.BlockSpec((tm, n_pad), lambda i: (i, 0)),       # adj row tile
                pl.BlockSpec((hp, hp), lambda i: (0, 0)),          # Wb^T (f32)
                pl.BlockSpec(memory_space=pltpu.MemorySpace.SMEM), # [alpha, 1/N]
            ],
            out_specs=[
                pl.BlockSpec((n_pad, 1), lambda i: (0, 0)),        # dp column
                pl.BlockSpec((n_pad, 1), lambda i: (0, 0)),        # dn column
            ],
            scratch_shapes=[
                pltpu.VMEM((n_pad, 2 * hp), cd),   # projected features (resident)
                pltpu.VMEM((n_pad, 2 * hp), cd),   # [h | h_tilde] rows
                pltpu.VMEM((1, hp), f32),          # running column sum of h
                pltpu.SemaphoreType.DMA,           # one-time feature DMA
            ],
        ),
        compiler_params=pltpu.CompilerParams(
            # Row tiles carry the h/h_tilde scratch + running column sum and
            # the final readout, so this grid axis is sequential.
            dimension_semantics=("arbitrary",),
            vmem_limit_bytes=vmem_limit,
        ),
    )(xw, adj_p, wbT_p, scalars)

    # Drop padded rows; [dp..., dn...] matches torch.cat((dp, dn), axis=1).
    return jnp.concatenate([dp[:N, 0], dn[:N, 0]]).reshape(1, 2 * N)


def dgi_reference(x, x_tilde, adj, W, Wb, alpha):
    """Ground-truth reference in numpy float64."""
    x64 = np.asarray(x, np.float64)
    xt64 = np.asarray(x_tilde, np.float64)
    adj64 = np.asarray(adj, np.float64)
    W64 = np.asarray(W, np.float64)
    Wb64 = np.asarray(Wb, np.float64)

    def gcn(v):
        z = (adj64 @ v) @ W64.T
        return np.where(z >= 0.0, z, alpha * z)

    h = gcn(x64)
    ht = gcn(xt64)
    s = 1.0 / (1.0 + np.exp(-h.mean(axis=0, keepdims=True)))
    u = s @ Wb64.T
    dp = u @ h.T
    dn = u @ ht.T
    return np.concatenate([dp, dn], axis=1)


if __name__ == "__main__":
    # Small but representative: H < F (the usual DGI regime for the
    # associativity rewrite), H not a multiple of 128 (exercises padding),
    # and two adjacency row tiles (exercises the accumulate/epilogue path).
    N, F, H = 256, 256, 96       # nodes, input_dim, hidden_dim

    key = jax.random.PRNGKey(0)
    kx, kxt, kadj, kw, kwb = jax.random.split(key, 5)

    x = jax.random.normal(kx, (N, F), dtype=jnp.float32)
    x_tilde = jax.random.normal(kxt, (N, F), dtype=jnp.float32)

    # Dense symmetric "adjacency" with self loops (torch.spmm with dense adj).
    a = (jax.random.uniform(kadj, (N, N)) > 0.9).astype(jnp.float32)
    adj = ((a + a.T) > 0).astype(jnp.float32) + jnp.eye(N, dtype=jnp.float32)

    # Xavier-uniform init (deterministic, matches the torch init scheme).
    bw = (6.0 / (F + H)) ** 0.5
    W = jax.random.uniform(kw, (H, F), minval=-bw, maxval=bw,
                           dtype=jnp.float32)            # nn.Linear(F, H) weight
    bwb = (6.0 / (H * H + H)) ** 0.5                     # nn.Bilinear weight [1,H,H]
    Wb = jax.random.uniform(kwb, (H, H), minval=-bwb, maxval=bwb,
                            dtype=jnp.float32)
    alpha = 0.25                                         # PReLU default init

    ref = dgi_reference(x, x_tilde, adj, W, Wb, alpha)
    scale = float(np.max(np.abs(ref)))

    # float32 path: tight tolerance.
    out32 = dgi_forward(x, x_tilde, adj, W, Wb, alpha, row_tile=128,
                        compute_dtype=jnp.float32)
    out32 = np.asarray(jax.block_until_ready(out32), np.float64)
    assert out32.shape == (1, 2 * N)
    assert np.max(np.abs(out32 - ref)) <= 1e-3 * scale + 1e-3

    # bf16 path (default): bf16 MXU operands, f32 accumulation.
    outbf = dgi_forward(x, x_tilde, adj, W, Wb, alpha, row_tile=128)
    outbf = np.asarray(jax.block_until_ready(outbf), np.float64)
    assert outbf.shape == (1, 2 * N)
    assert np.max(np.abs(outbf - ref)) <= 3e-2 * scale + 1e-3

    print("KERNEL_OK")
</pallas_src>

<mosaic_0001>
module attributes {stable_mosaic.version = 11 : i64} {
  func.func @_dgi_proj_kernel(%arg0: i32, %arg1: memref<128x256xf32, #tpu.memory_space<vmem>>, %arg2: memref<128x256xf32, #tpu.memory_space<vmem>>, %arg3: memref<256x128xf32, #tpu.memory_space<vmem>>, %arg4: memref<128x256xf32, #tpu.memory_space<vmem>>) attributes {dimension_semantics = [#tpu.dimension_semantics<parallel>], iteration_bounds = array<i64: 2>, scalar_prefetch = 0 : i64, scratch_operands = 0 : i64, tpu.core_type = #tpu.core_type<tc>, window_params = [{transform_indices = @transform_0, window_bounds = array<i64: 128, 256>}, {transform_indices = @transform_1, window_bounds = array<i64: 128, 256>}, {pipeline_mode = #tpu.pipeline_mode<synchronous>, transform_indices = @transform_2, window_bounds = array<i64: 256, 128>}, {transform_indices = @transform_3, window_bounds = array<i64: 128, 256>}]} {
    %c0 = arith.constant 0 : index
    %c0_0 = arith.constant 0 : index
    %0 = vector.load %arg3[%c0, %c0_0] : memref<256x128xf32, #tpu.memory_space<vmem>>, vector<256x128xf32>
    %c0_1 = arith.constant 0 : index
    %c0_2 = arith.constant 0 : index
    %1 = vector.load %arg1[%c0_1, %c0_2] : memref<128x256xf32, #tpu.memory_space<vmem>>, vector<128x256xf32>
    %cst = arith.constant dense<0.000000e+00> : vector<128x128xf32>
    %2 = tpu.matmul %1, %0, %cst {dimension_numbers = #tpu.dot_dimension_numbers<[1], [0], [0], [1], [0, 0, 1, 1], [], []>} : vector<128x256xf32>, vector<256x128xf32>, vector<128x128xf32> -> vector<128x128xf32>
    %c0_3 = arith.constant 0 : index
    %c0_4 = arith.constant 0 : index
    %3 = vector.load %arg2[%c0_3, %c0_4] : memref<128x256xf32, #tpu.memory_space<vmem>>, vector<128x256xf32>
    %cst_5 = arith.constant dense<0.000000e+00> : vector<128x128xf32>
    %4 = tpu.matmul %3, %0, %cst_5 {dimension_numbers = #tpu.dot_dimension_numbers<[1], [0], [0], [1], [0, 0, 1, 1], [], []>} : vector<128x256xf32>, vector<256x128xf32>, vector<128x128xf32> -> vector<128x128xf32>
    %c0_6 = arith.constant 0 : index
    %c0_7 = arith.constant 0 : index
    %5 = vector.load %arg4[%c0_6, %c0_7] : memref<128x256xf32, #tpu.memory_space<vmem>>, vector<128x128xf32>
    tpu.vector_store %arg4[%c0_6, %c0_7], %2 {strides = array<i32>} : memref<128x256xf32, #tpu.memory_space<vmem>>, vector<128x128xf32>,
    %c0_8 = arith.constant 0 : index
    %c128 = arith.constant 128 : index
    %6 = vector.load %arg4[%c0_8, %c128] : memref<128x256xf32, #tpu.memory_space<vmem>>, vector<128x128xf32>
    tpu.vector_store %arg4[%c0_8, %c128], %4 {strides = array<i32>} : memref<128x256xf32, #tpu.memory_space<vmem>>, vector<128x128xf32>,
    return
  }
  func.func @transform_0(%arg0: i32) -> (i32, i32) {
    %c0_i32 = arith.constant 0 : i32
    %c0_i32_0 = arith.constant 0 : i32
    return %arg0, %c0_i32 : i32, i32
  }
  func.func @transform_1(%arg0: i32) -> (i32, i32) {
    %c0_i32 = arith.constant 0 : i32
    %c0_i32_0 = arith.constant 0 : i32
    return %arg0, %c0_i32 : i32, i32
  }
  func.func @transform_2(%arg0: i32) -> (i32, i32) {
    %c0_i32 = arith.constant 0 : i32
    %c0_i32_0 = arith.constant 0 : i32
    %c0_i32_1 = arith.constant 0 : i32
    return %c0_i32, %c0_i32_0 : i32, i32
  }
  func.func @transform_3(%arg0: i32) -> (i32, i32) {
    %c0_i32 = arith.constant 0 : i32
    %c0_i32_0 = arith.constant 0 : i32
    return %arg0, %c0_i32 : i32, i32
  }
}

</mosaic_0001>

<llo_original>
// kernel: tpu_custom_call.1
$region0: #{tpu_custom_call.1}
  #allocation0 [shape = 'u32[]', space=smem, size = 0x4, offset = 0x4, fixed_abs, tag = 'smem constant byte address 0x4 - core index']
  #allocation1 [shape = 'u32[72,128]{1,0:T(1,128)}', space=vmem, size = 0x9000, scoped, tag = 'internal scratch']
  %s0 = inlined_call_operand.hbm [shape: f32[256,256], index: 0, kind: input, shape index: {}]
  %s1 = inlined_call_operand.hbm [shape: f32[256,256], index: 1, kind: input, shape index: {}]
  %s2 = inlined_call_operand.hbm [shape: f32[256,128], index: 2, kind: input, shape index: {}]
  %s3 = inlined_call_operand.hbm [shape: f32[256,256], index: 3, kind: output, shape index: {}]
  %s4 = sld [smem:[#allocation0]]
  $region57: #{tpu_custom_call.1} parent=0
    _
  %s6 = ssub.s32 1, %s4
  %s7 = scalar_select 0, %s6, %s4
  $region1: #{tpu_custom_call.1} parent=0
    #allocation2 [shape = 'u8[262144]{0}', space=vmem, size = 0x40000, scoped, tag = 'input window, operand 0']
    #allocation3 [shape = 's32[2]{0}', space=sflag, size = 0x8, scoped, tag = 'scoped memory for tpu_custom_call.1']
    #allocation4 [shape = 's32[2]{0}', space=sflag, size = 0x8, scoped, tag = 'scoped memory for tpu_custom_call.1']
    #allocation5 [shape = 'u8[262144]{0}', space=vmem, size = 0x40000, scoped, tag = 'input window, operand 1']
    #allocation6 [shape = 's32[2]{0}', space=sflag, size = 0x8, scoped, tag = 'scoped memory for tpu_custom_call.1']
    #allocation7 [shape = 'u8[131072]{0}', space=vmem, size = 0x20000, scoped, tag = 'input window, operand 2, single buffered']
    #allocation8 [shape = 'u8[262144]{0}', space=vmem, size = 0x40000, scoped, tag = 'output window, operand 0']
    %8 = vsyncpa [#allocation3], 0
    %s9 = scalar_lea.sflag [#allocation3], 1
    %10 = vsyncpa %s9, 0
    %11 = vsyncpa [#allocation6], 0
    %s12 = scalar_lea.sflag [#allocation6], 1
    %13 = vsyncpa %s12, 0
    %14 = vsyncpa [#allocation4], 0
    %s15 = scalar_lea.sflag [#allocation4], 1
    %16 = vsyncpa %s15, 0
    loop: start=0, step=1, limit=4
    $region2: #{tpu_custom_call.1} parent=1 // loop_pre_header
      _
    $region3: #{tpu_custom_call.1} parent=1 // loop_header
      %s18 = sphi 0, %s22
      %p19 = scmp.ge.s32.totalorder %s18, 4
      %s28 = sphi 0, %s30
      %s31 = sphi 0, %s28
      %s32 = sphi 0, %s31
      %s48 = sphi 0, %s32
      %s54 = sphi 0, %s56
      %s57 = sphi 0, %s54
      %s58 = sphi 0, %s57
      %s74 = sphi 0, %s58
      %s78 = sphi 0, %s78
      %s80 = sphi 0, %s78
      %s81 = sphi 0, %s80
      %s95 = sphi 0, %s81
      %s101 = sphi 0, %s103
      %s104 = sphi 0, %s101
      %s105 = sphi 0, %s104
      %s121 = sphi 0, %s105
    $region4: #{tpu_custom_call.1} parent=1 // loop_header_branch
      %21 = sbr.rel (%p19) target = $region8
    $region5: #{tpu_custom_call.1} parent=1 // loop_body
      %s23 = ssub.s32 %s18, 1
      %s24 = ssub.s32 %s18, 2
      %s25 = sadd.s32 %s18, 1
      %s26 = ssub.s32 %s18, %s25
      %p27 = scmp.eq.s32.totalorder %s26, 0
      %s29 = sadd.s32 %s28, 1
      %s30 = scalar_select %p27, %s28, %s29
      %p33 = pneg %p27
      %p34 = scmp.eq.s32.totalorder %s18, 1
      %p35 = por %p33, %p34
      %p36 = scmp.ne.s32.totalorder %s28, %s31
      %p37 = scmp.eq.s32.totalorder %s18, 0
      %p38 = por %p36, %p37
      %p39 = scmp.ne.s32.totalorder %s28, %s31
      %p40 = scmp.eq.s32.totalorder %s23, 1
      %p41 = por %p39, %p40
      %p42 = scmp.ne.s32.totalorder %s31, %s32
      %p43 = scmp.eq.s32.totalorder %s23, 0
      %p44 = por %p42, %p43
      %p45 = scmp.ne.s32.totalorder %s31, %s32
      %p46 = scmp.eq.s32.totalorder %s24, 1
      %p47 = por %p45, %p46
      %p49 = scmp.ne.s32.totalorder %s32, %s48
      %p50 = scmp.eq.s32.totalorder %s24, 0
      %p51 = por %p49, %p50
      %s52 = ssub.s32 %s18, %s25
      %p53 = scmp.eq.s32.totalorder %s52, 0
      %s55 = sadd.s32 %s54, 1
      %s56 = scalar_select %p53, %s54, %s55
      %p59 = pneg %p53
      %p60 = scmp.eq.s32.totalorder %s18, 1
      %p61 = por %p59, %p60
      %p62 = scmp.ne.s32.totalorder %s54, %s57
      %p63 = scmp.eq.s32.totalorder %s18, 0
      %p64 = por %p62, %p63
      %p65 = scmp.ne.s32.totalorder %s54, %s57
      %p66 = scmp.eq.s32.totalorder %s23, 1
      %p67 = por %p65, %p66
      %p68 = scmp.ne.s32.totalorder %s57, %s58
      %p69 = scmp.eq.s32.totalorder %s23, 0
      %p70 = por %p68, %p69
      %p71 = scmp.ne.s32.totalorder %s57, %s58
      %p72 = scmp.eq.s32.totalorder %s24, 1
      %p73 = por %p71, %p72
      %p75 = scmp.ne.s32.totalorder %s58, %s74
      %p76 = scmp.eq.s32.totalorder %s24, 0
      %p77 = por %p75, %p76
      %s79 = sadd.s32 %s78, 1
      %p82 = scmp.eq.s32.totalorder %s18, 1
      %p83 = scmp.ne.s32.totalorder %s78, %s80
      %p84 = scmp.eq.s32.totalorder %s18, 0
      %p85 = por %p83, %p84
      %p86 = scmp.ne.s32.totalorder %s78, %s80
      %p87 = scmp.eq.s32.totalorder %s23, 1
      %p88 = por %p86, %p87
      %p89 = scmp.ne.s32.totalorder %s80, %s81
      %p90 = scmp.eq.s32.totalorder %s23, 0
      %p91 = por %p89, %p90
      %p92 = scmp.ne.s32.totalorder %s80, %s81
      %p93 = scmp.eq.s32.totalorder %s24, 1
      %p94 = por %p92, %p93
      %p96 = scmp.ne.s32.totalorder %s81, %s95
      %p97 = scmp.eq.s32.totalorder %s24, 0
      %p98 = por %p96, %p97
      %s99 = ssub.s32 %s18, %s25
      %p100 = scmp.eq.s32.totalorder %s99, 0
      %s102 = sadd.s32 %s101, 1
      %s103 = scalar_select %p100, %s101, %s102
      %p106 = pneg %p100
      %p107 = scmp.eq.s32.totalorder %s18, 1
      %p108 = por %p106, %p107
      %p109 = scmp.ne.s32.totalorder %s101, %s104
      %p110 = scmp.eq.s32.totalorder %s18, 0
      %p111 = por %p109, %p110
      %p112 = scmp.ne.s32.totalorder %s101, %s104
      %p113 = scmp.eq.s32.totalorder %s23, 1
      %p114 = por %p112, %p113
      %p115 = scmp.ne.s32.totalorder %s104, %s105
      %p116 = scmp.eq.s32.totalorder %s23, 0
      %p117 = por %p115, %p116
      %p118 = scmp.ne.s32.totalorder %s104, %s105
      %p119 = scmp.eq.s32.totalorder %s24, 1
      %p120 = por %p118, %p119
      %p122 = scmp.ne.s32.totalorder %s105, %s121
      %p123 = scmp.eq.s32.totalorder %s24, 0
      %p124 = por %p122, %p123
      %p125 = scmp.le.s32.totalorder 1, %s18
      %p126 = scmp.lt.s32.totalorder %s18, 3
      %p127 = pnand %p125, %p126
      %p128 = pneg %p127
      // Predicated region
      $region9: #{tpu_custom_call.1} parent=5 // pred_check
        _
      $region10: #{tpu_custom_call.1} parent=5 // pred_check_branch
        %130 = sbr.rel (%p127) target = $region12
      $region11: #{tpu_custom_call.1} parent=5 // pred_region
        %s131 = ssub.s32 %s18, 1
        // Predicated region
        $region13: #{tpu_custom_call.1} parent=11 // pred_check
          %p132 = pneg %p91
        $region14: #{tpu_custom_call.1} parent=11 // pred_check_branch
          %134 = sbr.rel (%p132) target = $region16
        $region15: #{tpu_custom_call.1} parent=11 // pred_region
          %136 = vsyncadd [#allocation6], 0
          %s137 = sshll.u32 %s2, 4
          %s138 = int_to_ptr.hbm [resolvable:$true] %s137
          %s139 = sshll.u32 [#allocation7], 4
          %s140 = int_to_ptr.vmem [resolvable:$true] %s139
          %145 = dma.hbm_to_vmem [thread:$0]  %s138, 4096, %s140, [#allocation6], 128, 128, 8
        $region16: #{tpu_custom_call.1} parent=11 // pred_fallthru
          _
      $region12: #{tpu_custom_call.1} parent=5 // pred_fallthru
        _
      %p146 = scmp.lt.s32.totalorder %s18, 2
      // Predicated region
      $region17: #{tpu_custom_call.1} parent=5 // pred_check
        %p147 = pneg %p146
      $region18: #{tpu_custom_call.1} parent=5 // pred_check_branch
        %149 = sbr.rel (%p147) target = $region20
      $region19: #{tpu_custom_call.1} parent=5 // pred_region
        // Predicated region
        $region21: #{tpu_custom_call.1} parent=19 // pred_check
          %p150 = pneg %p38
        $region22: #{tpu_custom_call.1} parent=19 // pred_check_branch
          %152 = sbr.rel (%p150) target = $region24
        $region23: #{tpu_custom_call.1} parent=19 // pred_region
          %s153 = sand.u32 %s28, 1
          %s154 = scalar_lea.sflag [#allocation3], %s153
          %s155 = sand.u32 %s28, 1
          %s156 = smul.addr %s155, 256
          %s157 = scalar_lea.vmem [#allocation2], %s156
          %s158 = smul.u32 16, %s18
          %160 = vsyncadd %s154, 0
          %s161 = smul.addr %s158, 2
          %s162 = smul.addr %s161, 8
          %s163 = scalar_lea.hbm %s0, %s162
          %s164 = sshll.u32 %s163, 4
          %s165 = int_to_ptr.hbm [resolvable:$true] %s164
          %s166 = sshll.u32 %s157, 4
          %s167 = int_to_ptr.vmem [resolvable:$true] %s166
          %172 = dma.hbm_to_vmem [thread:$0]  %s165, 4096, %s167, %s154, 256, 256, 16
        $region24: #{tpu_custom_call.1} parent=19 // pred_fallthru
          _
        // Predicated region
        $region25: #{tpu_custom_call.1} parent=19 // pred_check
          %p173 = pneg %p64
        $region26: #{tpu_custom_call.1} parent=19 // pred_check_branch
          %175 = sbr.rel (%p173) target = $region28
        $region27: #{tpu_custom_call.1} parent=19 // pred_region
          %s176 = sand.u32 %s18, 1
          %s177 = scalar_lea.sflag [#allocation6], %s176
          %s178 = sand.u32 %s54, 1
          %s179 = smul.addr %s178, 256
          %s180 = scalar_lea.vmem [#allocation5], %s179
          %s181 = smul.u32 16, %s18
          %183 = vsyncadd %s177, 0
          %s184 = smul.addr %s181, 2
          %s185 = smul.addr %s184, 8
          %s186 = scalar_lea.hbm %s1, %s185
          %s187 = sshll.u32 %s186, 4
          %s188 = int_to_ptr.hbm [resolvable:$true] %s187
          %s189 = sshll.u32 %s180, 4
          %s190 = int_to_ptr.vmem [resolvable:$true] %s189
          %195 = dma.hbm_to_vmem [thread:$0]  %s188, 4096, %s190, %s177, 256, 256, 16
        $region28: #{tpu_custom_call.1} parent=19 // pred_fallthru
          _
      $region20: #{tpu_custom_call.1} parent=5 // pred_fallthru
        _
      %p196 = scmp.le.s32.totalorder 1, %s18
      %p197 = scmp.lt.s32.totalorder %s18, 3
      %p198 = pnand %p196, %p197
      %p199 = pneg %p198
      // Predicated region
      $region29: #{tpu_custom_call.1} parent=5 // pred_check
        _
      $region30: #{tpu_custom_call.1} parent=5 // pred_check_branch
        %201 = sbr.rel (%p198) target = $region32
      $region31: #{tpu_custom_call.1} parent=5 // pred_region
        %s202 = ssub.s32 %s18, 1
        %s203 = sand.u32 %s31, 1
        %s204 = scalar_lea.sflag [#allocation3], %s203
        %s205 = sand.u32 %s31, 1
        %s206 = smul.addr %s205, 256
        %s207 = scalar_lea.vmem [#allocation2], %s206
        // Predicated region
        $region33: #{tpu_custom_call.1} parent=31 // pred_check
          %p208 = pneg %p44
        $region34: #{tpu_custom_call.1} parent=31 // pred_check_branch
          %210 = sbr.rel (%p208) target = $region36
        $region35: #{tpu_custom_call.1} parent=31 // pred_region
          %212 = dma.done %s204, 4096
        $region36: #{tpu_custom_call.1} parent=31 // pred_fallthru
          _
        %s213 = sand.u32 %s23, 1
        %s214 = scalar_lea.sflag [#allocation6], %s213
        %s215 = sand.u32 %s57, 1
        %s216 = smul.addr %s215, 256
        %s217 = scalar_lea.vmem [#allocation5], %s216
        // Predicated region
        $region37: #{tpu_custom_call.1} parent=31 // pred_check
          %p218 = pneg %p70
        $region38: #{tpu_custom_call.1} parent=31 // pred_check_branch
          %220 = sbr.rel (%p218) target = $region40
        $region39: #{tpu_custom_call.1} parent=31 // pred_region
          %222 = dma.done %s214, 4096
        $region40: #{tpu_custom_call.1} parent=31 // pred_fallthru
          _
        // Predicated region
        $region41: #{tpu_custom_call.1} parent=31 // pred_check
          %p223 = pneg %p91
        $region42: #{tpu_custom_call.1} parent=31 // pred_check_branch
          %225 = sbr.rel (%p223) target = $region44
        $region43: #{tpu_custom_call.1} parent=31 // pred_region
          %227 = dma.done [#allocation6], 4096
        $region44: #{tpu_custom_call.1} parent=31 // pred_fallthru
          _
        %s228 = sand.u32 %s31, 1
        %s229 = scalar_lea.sflag [#allocation3], %s228
        %s230 = sand.u32 %s31, 1
        %s231 = smul.addr %s230, 256
        %s232 = scalar_lea.vmem [#allocation2], %s231
        %p233 = pneg %p44
        %p234 = pneg %p41
        %s235 = sand.u32 %s23, 1
        %s236 = scalar_lea.sflag [#allocation6], %s235
        %s237 = sand.u32 %s57, 1
        %s238 = smul.addr %s237, 256
        %s239 = scalar_lea.vmem [#allocation5], %s238
        %p240 = pneg %p70
        %p241 = pneg %p67
        %p242 = pneg %p91
        %p243 = pneg %p88
        %p244 = pneg %p117
        %p245 = pneg %p114
        %s246 = sand.u32 %s104, 1
        %s247 = scalar_lea.sflag [#allocation4], %s246
        %s248 = sand.u32 %s104, 1
        %s249 = smul.addr %s248, 256
        %s250 = scalar_lea.vmem [#allocation8], %s249
        %s251 = smul.u32 16, %s23
        %s252 = smul.u32 16, %s23
        %s253 = smul.u32 16, %s23
        %v254 = vld [vmem:[#allocation7] sm:$0xff]
        %v255 = vld [vmem:[#allocation7 + $0x8] sm:$0xff]
        %v256 = vld [vmem:[#allocation7 + $0x10] sm:$0xff]
        %v257 = vld [vmem:[#allocation7 + $0x18] sm:$0xff]
        %v258 = vld [vmem:[#allocation7 + $0x20] sm:$0xff]
        %v259 = vld [vmem:[#allocation7 + $0x28] sm:$0xff]
        %v260 = vld [vmem:[#allocation7 + $0x30] sm:$0xff]
        %v261 = vld [vmem:[#allocation7 + $0x38] sm:$0xff]
        %v262 = vld [vmem:[#allocation7 + $0x40] sm:$0xff]
        %v263 = vld [vmem:[#allocation7 + $0x48] sm:$0xff]
        %v264 = vld [vmem:[#allocation7 + $0x50] sm:$0xff]
        %v265 = vld [vmem:[#allocation7 + $0x58] sm:$0xff]
        %v266 = vld [vmem:[#allocation7 + $0x60] sm:$0xff]
        %v267 = vld [vmem:[#allocation7 + $0x68] sm:$0xff]
        %v268 = vld [vmem:[#allocation7 + $0x70] sm:$0xff]
        %v269 = vld [vmem:[#allocation7 + $0x78] sm:$0xff]
        %v270 = vld [vmem:[#allocation7 + $0x80] sm:$0xff]
        %v271 = vld [vmem:[#allocation7 + $0x88] sm:$0xff]
        %v272 = vld [vmem:[#allocation7 + $0x90] sm:$0xff]
        %v273 = vld [vmem:[#allocation7 + $0x98] sm:$0xff]
        %v274 = vld [vmem:[#allocation7 + $0xa0] sm:$0xff]
        %v275 = vld [vmem:[#allocation7 + $0xa8] sm:$0xff]
        %v276 = vld [vmem:[#allocation7 + $0xb0] sm:$0xff]
        %v277 = vld [vmem:[#allocation7 + $0xb8] sm:$0xff]
        %v278 = vld [vmem:[#allocation7 + $0xc0] sm:$0xff]
        %v279 = vld [vmem:[#allocation7 + $0xc8] sm:$0xff]
        %v280 = vld [vmem:[#allocation7 + $0xd0] sm:$0xff]
        %v281 = vld [vmem:[#allocation7 + $0xd8] sm:$0xff]
        %v282 = vld [vmem:[#allocation7 + $0xe0] sm:$0xff]
        %v283 = vld [vmem:[#allocation7 + $0xe8] sm:$0xff]
        %v284 = vld [vmem:[#allocation7 + $0xf0] sm:$0xff]
        %v285 = vld [vmem:[#allocation7 + $0xf8] sm:$0xff]
        %v286 = vld [vmem:[%s207] sm:$0xff]
        %v287 = vld [vmem:[%s207 + $0x8] sm:$0xff]
        %v288 = vld [vmem:[%s207 + $0x10] sm:$0xff]
        %v289 = vld [vmem:[%s207 + $0x18] sm:$0xff]
        %v290 = vld [vmem:[%s207 + $0x20] sm:$0xff]
        %v291 = vld [vmem:[%s207 + $0x28] sm:$0xff]
        %v292 = vld [vmem:[%s207 + $0x30] sm:$0xff]
        %v293 = vld [vmem:[%s207 + $0x38] sm:$0xff]
        %v294 = vld [vmem:[%s207 + $0x40] sm:$0xff]
        %v295 = vld [vmem:[%s207 + $0x48] sm:$0xff]
        %v296 = vld [vmem:[%s207 + $0x50] sm:$0xff]
        %v297 = vld [vmem:[%s207 + $0x58] sm:$0xff]
        %v298 = vld [vmem:[%s207 + $0x60] sm:$0xff]
        %v299 = vld [vmem:[%s207 + $0x68] sm:$0xff]
        %v300 = vld [vmem:[%s207 + $0x70] sm:$0xff]
        %v301 = vld [vmem:[%s207 + $0x78] sm:$0xff]
        %v302 = vld [vmem:[%s207 + $0x80] sm:$0xff]
        %v303 = vld [vmem:[%s207 + $0x88] sm:$0xff]
        %v304 = vld [vmem:[%s207 + $0x90] sm:$0xff]
        %v305 = vld [vmem:[%s207 + $0x98] sm:$0xff]
        %v306 = vld [vmem:[%s207 + $0xa0] sm:$0xff]
        %v307 = vld [vmem:[%s207 + $0xa8] sm:$0xff]
        %v308 = vld [vmem:[%s207 + $0xb0] sm:$0xff]
        %v309 = vld [vmem:[%s207 + $0xb8] sm:$0xff]
        %v310 = vld [vmem:[%s207 + $0xc0] sm:$0xff]
        %v311 = vld [vmem:[%s207 + $0xc8] sm:$0xff]
        %v312 = vld [vmem:[%s207 + $0xd0] sm:$0xff]
        %v313 = vld [vmem:[%s207 + $0xd8] sm:$0xff]
        %v314 = vld [vmem:[%s207 + $0xe0] sm:$0xff]
        %v315 = vld [vmem:[%s207 + $0xe8] sm:$0xff]
        %v316 = vld [vmem:[%s207 + $0xf0] sm:$0xff]
        %v317 = vld [vmem:[%s207 + $0xf8] sm:$0xff]
        %318 = vmatpush.msra.mxu0 %v269
        %319 = vmatpush.msra.mxu0 %v268
        %320 = vmatpush.msra.mxu0 %v267
        %321 = vmatpush.msra.mxu0 %v266
        %322 = vmatpush.msra.mxu0 %v265
        %323 = vmatpush.msra.mxu0 %v264
        %324 = vmatpush.msra.mxu0 %v263
        %325 = vmatpush.msra.mxu0 %v262
        %326 = vmatpush.msra.mxu0 %v261
        %327 = vmatpush.msra.mxu0 %v260
        %328 = vmatpush.msra.mxu0 %v259
        %329 = vmatpush.msra.mxu0 %v258
        %330 = vmatpush.msra.mxu0 %v257
        %331 = vmatpush.msra.mxu0 %v256
        %332 = vmatpush.msra.mxu0 %v255
        %333 = vmatpush.msra.mxu0 %v254
        %334 = vmatmul.f32.gmra.mxu0 %v286
        %v335 = vpop.f32.mrf.mxu0
        %v336 = vadd.f32 0.0, %v335
        %337 = vmatmul.f32.gmra.mxu0 %v288
        %v338 = vpop.f32.mrf.mxu0
        %v339 = vadd.f32 0.0, %v338
        %340 = vmatmul.f32.gmra.mxu0 %v290
        %v341 = vpop.f32.mrf.mxu0
        %v342 = vadd.f32 0.0, %v341
        %343 = vmatmul.f32.gmra.mxu0 %v292
        %v344 = vpop.f32.mrf.mxu0
        %v345 = vadd.f32 0.0, %v344
        %346 = vmatmul.f32.gmra.mxu0 %v294
        %v347 = vpop.f32.mrf.mxu0
        %v348 = vadd.f32 0.0, %v347
        %349 = vmatmul.f32.gmra.mxu0 %v296
        %v350 = vpop.f32.mrf.mxu0
        %v351 = vadd.f32 0.0, %v350
        %352 = vmatmul.f32.gmra.mxu0 %v298
        %v353 = vpop.f32.mrf.mxu0
        %v354 = vadd.f32 0.0, %v353
        %355 = vmatmul.f32.gmra.mxu0 %v300
        %v356 = vpop.f32.mrf.mxu0
        %v357 = vadd.f32 0.0, %v356
        %358 = vmatmul.f32.gmra.mxu0 %v302
        %v359 = vpop.f32.mrf.mxu0
        %v360 = vadd.f32 0.0, %v359
        %361 = vmatmul.f32.gmra.mxu0 %v304
        %v362 = vpop.f32.mrf.mxu0
        %v363 = vadd.f32 0.0, %v362
        %364 = vmatmul.f32.gmra.mxu0 %v306
        %v365 = vpop.f32.mrf.mxu0
        %v366 = vadd.f32 0.0, %v365
        %367 = vmatmul.f32.gmra.mxu0 %v308
        %v368 = vpop.f32.mrf.mxu0
        %v369 = vadd.f32 0.0, %v368
        %370 = vmatmul.f32.gmra.mxu0 %v310
        %v371 = vpop.f32.mrf.mxu0
        %v372 = vadd.f32 0.0, %v371
        %373 = vmatmul.f32.gmra.mxu0 %v312
        %v374 = vpop.f32.mrf.mxu0
        %v375 = vadd.f32 0.0, %v374
        %376 = vmatmul.f32.gmra.mxu0 %v314
        %v377 = vpop.f32.mrf.mxu0
        %v378 = vadd.f32 0.0, %v377
        %379 = vmatmul.f32.gmra.mxu0 %v316
        %v380 = vpop.f32.mrf.mxu0
        %v381 = vadd.f32 0.0, %v380
        %382 = vdwg.mxu0
        %383 = vmatpush.msra.mxu0 %v285
        %384 = vmatpush.msra.mxu0 %v284
        %385 = vmatpush.msra.mxu0 %v283
        %386 = vmatpush.msra.mxu0 %v282
        %387 = vmatpush.msra.mxu0 %v281
        %388 = vmatpush.msra.mxu0 %v280
        %389 = vmatpush.msra.mxu0 %v279
        %390 = vmatpush.msra.mxu0 %v278
        %391 = vmatpush.msra.mxu0 %v277
        %392 = vmatpush.msra.mxu0 %v276
        %393 = vmatpush.msra.mxu0 %v275
        %394 = vmatpush.msra.mxu0 %v274
        %395 = vmatpush.msra.mxu0 %v273
        %396 = vmatpush.msra.mxu0 %v272
        %397 = vmatpush.msra.mxu0 %v271
        %398 = vmatpush.msra.mxu0 %v270
        %399 = vmatmul.f32.gmra.mxu0 %v287
        %v400 = vpop.f32.mrf.mxu0
        %v401 = vadd.f32 %v336, %v400
        %402 = vmatmul.f32.gmra.mxu0 %v289
        %v403 = vpop.f32.mrf.mxu0
        %v404 = vadd.f32 %v339, %v403
        %405 = vmatmul.f32.gmra.mxu0 %v291
        %v406 = vpop.f32.mrf.mxu0
        %v407 = vadd.f32 %v342, %v406
        %408 = vmatmul.f32.gmra.mxu0 %v293
        %v409 = vpop.f32.mrf.mxu0
        %v410 = vadd.f32 %v345, %v409
        %411 = vmatmul.f32.gmra.mxu0 %v295
        %v412 = vpop.f32.mrf.mxu0
        %v413 = vadd.f32 %v348, %v412
        %414 = vmatmul.f32.gmra.mxu0 %v297
        %v415 = vpop.f32.mrf.mxu0
        %v416 = vadd.f32 %v351, %v415
        %417 = vmatmul.f32.gmra.mxu0 %v299
        %v418 = vpop.f32.mrf.mxu0
        %v419 = vadd.f32 %v354, %v418
        %420 = vmatmul.f32.gmra.mxu0 %v301
        %v421 = vpop.f32.mrf.mxu0
        %v422 = vadd.f32 %v357, %v421
        %423 = vmatmul.f32.gmra.mxu0 %v303
        %v424 = vpop.f32.mrf.mxu0
        %v425 = vadd.f32 %v360, %v424
        %426 = vmatmul.f32.gmra.mxu0 %v305
        %v427 = vpop.f32.mrf.mxu0
        %v428 = vadd.f32 %v363, %v427
        %429 = vmatmul.f32.gmra.mxu0 %v307
        %v430 = vpop.f32.mrf.mxu0
        %v431 = vadd.f32 %v366, %v430
        %432 = vmatmul.f32.gmra.mxu0 %v309
        %v433 = vpop.f32.mrf.mxu0
        %v434 = vadd.f32 %v369, %v433
        %435 = vmatmul.f32.gmra.mxu0 %v311
        %v436 = vpop.f32.mrf.mxu0
        %v437 = vadd.f32 %v372, %v436
        %438 = vmatmul.f32.gmra.mxu0 %v313
        %v439 = vpop.f32.mrf.mxu0
        %v440 = vadd.f32 %v375, %v439
        %441 = vmatmul.f32.gmra.mxu0 %v315
        %v442 = vpop.f32.mrf.mxu0
        %v443 = vadd.f32 %v378, %v442
        %444 = vmatmul.f32.gmra.mxu0 %v317
        %v445 = vpop.f32.mrf.mxu0
        %v446 = vadd.f32 %v381, %v445
        %447 = vdwg.mxu0
        %v448 = vld [vmem:[%s217] sm:$0xff]
        %v449 = vld [vmem:[%s217 + $0x8] sm:$0xff]
        %v450 = vld [vmem:[%s217 + $0x10] sm:$0xff]
        %v451 = vld [vmem:[%s217 + $0x18] sm:$0xff]
        %v452 = vld [vmem:[%s217 + $0x20] sm:$0xff]
        %v453 = vld [vmem:[%s217 + $0x28] sm:$0xff]
        %v454 = vld [vmem:[%s217 + $0x30] sm:$0xff]
        %v455 = vld [vmem:[%s217 + $0x38] sm:$0xff]
        %v456 = vld [vmem:[%s217 + $0x40] sm:$0xff]
        %v457 = vld [vmem:[%s217 + $0x48] sm:$0xff]
        %v458 = vld [vmem:[%s217 + $0x50] sm:$0xff]
        %v459 = vld [vmem:[%s217 + $0x58] sm:$0xff]
        %v460 = vld [vmem:[%s217 + $0x60] sm:$0xff]
        %v461 = vld [vmem:[%s217 + $0x68] sm:$0xff]
        %v462 = vld [vmem:[%s217 + $0x70] sm:$0xff]
        %v463 = vld [vmem:[%s217 + $0x78] sm:$0xff]
        %v464 = vld [vmem:[%s217 + $0x80] sm:$0xff]
        %v465 = vld [vmem:[%s217 + $0x88] sm:$0xff]
        %v466 = vld [vmem:[%s217 + $0x90] sm:$0xff]
        %v467 = vld [vmem:[%s217 + $0x98] sm:$0xff]
        %v468 = vld [vmem:[%s217 + $0xa0] sm:$0xff]
        %v469 = vld [vmem:[%s217 + $0xa8] sm:$0xff]
        %v470 = vld [vmem:[%s217 + $0xb0] sm:$0xff]
        %v471 = vld [vmem:[%s217 + $0xb8] sm:$0xff]
        %v472 = vld [vmem:[%s217 + $0xc0] sm:$0xff]
        %v473 = vld [vmem:[%s217 + $0xc8] sm:$0xff]
        %v474 = vld [vmem:[%s217 + $0xd0] sm:$0xff]
        %v475 = vld [vmem:[%s217 + $0xd8] sm:$0xff]
        %v476 = vld [vmem:[%s217 + $0xe0] sm:$0xff]
        %v477 = vld [vmem:[%s217 + $0xe8] sm:$0xff]
        %v478 = vld [vmem:[%s217 + $0xf0] sm:$0xff]
        %v479 = vld [vmem:[%s217 + $0xf8] sm:$0xff]
        %480 = vmatpush.msra.mxu0 %v269
        %481 = vmatpush.msra.mxu0 %v268
        %482 = vmatpush.msra.mxu0 %v267
        %483 = vmatpush.msra.mxu0 %v266
        %484 = vmatpush.msra.mxu0 %v265
        %485 = vmatpush.msra.mxu0 %v264
        %486 = vmatpush.msra.mxu0 %v263
        %487 = vmatpush.msra.mxu0 %v262
        %488 = vmatpush.msra.mxu0 %v261
        %489 = vmatpush.msra.mxu0 %v260
        %490 = vmatpush.msra.mxu0 %v259
        %491 = vmatpush.msra.mxu0 %v258
        %492 = vmatpush.msra.mxu0 %v257
        %493 = vmatpush.msra.mxu0 %v256
        %494 = vmatpush.msra.mxu0 %v255
        %495 = vmatpush.msra.mxu0 %v254
        %496 = vmatmul.f32.gmra.mxu0 %v448
        %v497 = vpop.f32.mrf.mxu0
        %v498 = vadd.f32 0.0, %v497
        %499 = vmatmul.f32.gmra.mxu0 %v450
        %v500 = vpop.f32.mrf.mxu0
        %v501 = vadd.f32 0.0, %v500
        %502 = vmatmul.f32.gmra.mxu0 %v452
        %v503 = vpop.f32.mrf.mxu0
        %v504 = vadd.f32 0.0, %v503
        %505 = vmatmul.f32.gmra.mxu0 %v454
        %v506 = vpop.f32.mrf.mxu0
        %v507 = vadd.f32 0.0, %v506
        %508 = vmatmul.f32.gmra.mxu0 %v456
        %v509 = vpop.f32.mrf.mxu0
        %v510 = vadd.f32 0.0, %v509
        %511 = vmatmul.f32.gmra.mxu0 %v458
        %v512 = vpop.f32.mrf.mxu0
        %v513 = vadd.f32 0.0, %v512
        %514 = vmatmul.f32.gmra.mxu0 %v460
        %v515 = vpop.f32.mrf.mxu0
        %v516 = vadd.f32 0.0, %v515
        %517 = vmatmul.f32.gmra.mxu0 %v462
        %v518 = vpop.f32.mrf.mxu0
        %v519 = vadd.f32 0.0, %v518
        %520 = vmatmul.f32.gmra.mxu0 %v464
        %v521 = vpop.f32.mrf.mxu0
        %v522 = vadd.f32 0.0, %v521
        %523 = vmatmul.f32.gmra.mxu0 %v466
        %v524 = vpop.f32.mrf.mxu0
        %v525 = vadd.f32 0.0, %v524
        %526 = vmatmul.f32.gmra.mxu0 %v468
        %v527 = vpop.f32.mrf.mxu0
        %v528 = vadd.f32 0.0, %v527
        %529 = vmatmul.f32.gmra.mxu0 %v470
        %v530 = vpop.f32.mrf.mxu0
        %v531 = vadd.f32 0.0, %v530
        %532 = vmatmul.f32.gmra.mxu0 %v472
        %v533 = vpop.f32.mrf.mxu0
        %v534 = vadd.f32 0.0, %v533
        %535 = vmatmul.f32.gmra.mxu0 %v474
        %v536 = vpop.f32.mrf.mxu0
        %v537 = vadd.f32 0.0, %v536
        %538 = vmatmul.f32.gmra.mxu0 %v476
        %v539 = vpop.f32.mrf.mxu0
        %v540 = vadd.f32 0.0, %v539
        %541 = vmatmul.f32.gmra.mxu0 %v478
        %v542 = vpop.f32.mrf.mxu0
        %v543 = vadd.f32 0.0, %v542
        %544 = vdwg.mxu0
        %545 = vmatpush.msra.mxu0 %v285
        %546 = vmatpush.msra.mxu0 %v284
        %547 = vmatpush.msra.mxu0 %v283
        %548 = vmatpush.msra.mxu0 %v282
        %549 = vmatpush.msra.mxu0 %v281
        %550 = vmatpush.msra.mxu0 %v280
        %551 = vmatpush.msra.mxu0 %v279
        %552 = vmatpush.msra.mxu0 %v278
        %553 = vmatpush.msra.mxu0 %v277
        %554 = vmatpush.msra.mxu0 %v276
        %555 = vmatpush.msra.mxu0 %v275
        %556 = vmatpush.msra.mxu0 %v274
        %557 = vmatpush.msra.mxu0 %v273
        %558 = vmatpush.msra.mxu0 %v272
        %559 = vmatpush.msra.mxu0 %v271
        %560 = vmatpush.msra.mxu0 %v270
        %561 = vmatmul.f32.gmra.mxu0 %v449
        %v562 = vpop.f32.mrf.mxu0
        %v563 = vadd.f32 %v498, %v562
        %564 = vmatmul.f32.gmra.mxu0 %v451
        %v565 = vpop.f32.mrf.mxu0
        %v566 = vadd.f32 %v501, %v565
        %567 = vmatmul.f32.gmra.mxu0 %v453
        %v568 = vpop.f32.mrf.mxu0
        %v569 = vadd.f32 %v504, %v568
        %570 = vmatmul.f32.gmra.mxu0 %v455
        %v571 = vpop.f32.mrf.mxu0
        %v572 = vadd.f32 %v507, %v571
        %573 = vmatmul.f32.gmra.mxu0 %v457
        %v574 = vpop.f32.mrf.mxu0
        %v575 = vadd.f32 %v510, %v574
        %576 = vmatmul.f32.gmra.mxu0 %v459
        %v577 = vpop.f32.mrf.mxu0
        %v578 = vadd.f32 %v513, %v577
        %579 = vmatmul.f32.gmra.mxu0 %v461
        %v580 = vpop.f32.mrf.mxu0
        %v581 = vadd.f32 %v516, %v580
        %582 = vmatmul.f32.gmra.mxu0 %v463
        %v583 = vpop.f32.mrf.mxu0
        %v584 = vadd.f32 %v519, %v583
        %585 = vmatmul.f32.gmra.mxu0 %v465
        %v586 = vpop.f32.mrf.mxu0
        %v587 = vadd.f32 %v522, %v586
        %588 = vmatmul.f32.gmra.mxu0 %v467
        %v589 = vpop.f32.mrf.mxu0
        %v590 = vadd.f32 %v525, %v589
        %591 = vmatmul.f32.gmra.mxu0 %v469
        %v592 = vpop.f32.mrf.mxu0
        %v593 = vadd.f32 %v528, %v592
        %594 = vmatmul.f32.gmra.mxu0 %v471
        %v595 = vpop.f32.mrf.mxu0
        %v596 = vadd.f32 %v531, %v595
        %597 = vmatmul.f32.gmra.mxu0 %v473
        %v598 = vpop.f32.mrf.mxu0
        %v599 = vadd.f32 %v534, %v598
        %600 = vmatmul.f32.gmra.mxu0 %v475
        %v601 = vpop.f32.mrf.mxu0
        %v602 = vadd.f32 %v537, %v601
        %603 = vmatmul.f32.gmra.mxu0 %v477
        %v604 = vpop.f32.mrf.mxu0
        %v605 = vadd.f32 %v540, %v604
        %606 = vmatmul.f32.gmra.mxu0 %v479
        %v607 = vpop.f32.mrf.mxu0
        %v608 = vadd.f32 %v543, %v607
        %609 = vdwg.mxu0
        %610 = vst [vmem:[%s250] sm:$0xff] %v401
        %611 = vst [vmem:[%s250 + $0x10] sm:$0xff] %v404
        %612 = vst [vmem:[%s250 + $0x20] sm:$0xff] %v407
        %613 = vst [vmem:[%s250 + $0x30] sm:$0xff] %v410
        %614 = vst [vmem:[%s250 + $0x40] sm:$0xff] %v413
        %615 = vst [vmem:[%s250 + $0x50] sm:$0xff] %v416
        %616 = vst [vmem:[%s250 + $0x60] sm:$0xff] %v419
        %617 = vst [vmem:[%s250 + $0x70] sm:$0xff] %v422
        %618 = vst [vmem:[%s250 + $0x80] sm:$0xff] %v425
        %619 = vst [vmem:[%s250 + $0x90] sm:$0xff] %v428
        %620 = vst [vmem:[%s250 + $0xa0] sm:$0xff] %v431
        %621 = vst [vmem:[%s250 + $0xb0] sm:$0xff] %v434
        %622 = vst [vmem:[%s250 + $0xc0] sm:$0xff] %v437
        %623 = vst [vmem:[%s250 + $0xd0] sm:$0xff] %v440
        %624 = vst [vmem:[%s250 + $0xe0] sm:$0xff] %v443
        %625 = vst [vmem:[%s250 + $0xf0] sm:$0xff] %v446
        %626 = vst [vmem:[%s250 + $0x8] sm:$0xff] %v563
        %627 = vst [vmem:[%s250 + $0x18] sm:$0xff] %v566
        %628 = vst [vmem:[%s250 + $0x28] sm:$0xff] %v569
        %629 = vst [vmem:[%s250 + $0x38] sm:$0xff] %v572
        %630 = vst [vmem:[%s250 + $0x48] sm:$0xff] %v575
        %631 = vst [vmem:[%s250 + $0x58] sm:$0xff] %v578
        %632 = vst [vmem:[%s250 + $0x68] sm:$0xff] %v581
        %633 = vst [vmem:[%s250 + $0x78] sm:$0xff] %v584
        %634 = vst [vmem:[%s250 + $0x88] sm:$0xff] %v587
        %635 = vst [vmem:[%s250 + $0x98] sm:$0xff] %v590
        %636 = vst [vmem:[%s250 + $0xa8] sm:$0xff] %v593
        %637 = vst [vmem:[%s250 + $0xb8] sm:$0xff] %v596
        %638 = vst [vmem:[%s250 + $0xc8] sm:$0xff] %v599
        %639 = vst [vmem:[%s250 + $0xd8] sm:$0xff] %v602
        %640 = vst [vmem:[%s250 + $0xe8] sm:$0xff] %v605
        %641 = vst [vmem:[%s250 + $0xf8] sm:$0xff] %v608
        %s642 = sand.u32 %s104, 1
        %s643 = scalar_lea.sflag [#allocation4], %s642
        %s644 = sand.u32 %s104, 1
        %s645 = smul.addr %s644, 256
        %s646 = scalar_lea.vmem [#allocation8], %s645
        // Predicated region
        $region45: #{tpu_custom_call.1} parent=31 // pred_check
          %p647 = pneg %p114
        $region46: #{tpu_custom_call.1} parent=31 // pred_check_branch
          %649 = sbr.rel (%p647) target = $region48
        $region47: #{tpu_custom_call.1} parent=31 // pred_region
          %s650 = smul.u32 16, %s23
          %652 = vsyncadd %s643, 0
          %s653 = smul.addr %s650, 2
          %s654 = smul.addr %s653, 8
          %s655 = scalar_lea.hbm %s3, %s654
          %s656 = sshll.u32 %s646, 4
          %s657 = int_to_ptr.vmem [resolvable:$true] %s656
          %s658 = sshll.u32 %s655, 4
          %s659 = int_to_ptr.hbm [resolvable:$true] %s658
          %664 = dma.vmem_to_hbm [thread:$0]  %s657, 4096, %s659, %s643, 256, 256, 16
        $region48: #{tpu_custom_call.1} parent=31 // pred_fallthru
          _
      $region32: #{tpu_custom_call.1} parent=5 // pred_fallthru
        _
      %p665 = scmp.le.s32.totalorder 2, %s18
      // Predicated region
      $region49: #{tpu_custom_call.1} parent=5 // pred_check
        %p666 = pneg %p665
      $region50: #{tpu_custom_call.1} parent=5 // pred_check_branch
        %668 = sbr.rel (%p666) target = $region52
      $region51: #{tpu_custom_call.1} parent=5 // pred_region
        %s669 = ssub.s32 %s18, 2
        // Predicated region
        $region53: #{tpu_custom_call.1} parent=51 // pred_check
          %p670 = pneg %p120
        $region54: #{tpu_custom_call.1} parent=51 // pred_check_branch
          %672 = sbr.rel (%p670) target = $region56
        $region55: #{tpu_custom_call.1} parent=51 // pred_region
          %s673 = sand.u32 %s105, 1
          %s674 = scalar_lea.sflag [#allocation4], %s673
          %s675 = sand.u32 %s105, 1
          %s676 = smul.addr %s675, 256
          %s677 = scalar_lea.vmem [#allocation8], %s676
          %679 = dma.done %s674, 4096
        $region56: #{tpu_custom_call.1} parent=51 // pred_fallthru
          _
      $region52: #{tpu_custom_call.1} parent=5 // pred_fallthru
        _
    $region6: #{tpu_custom_call.1} parent=1 // loop_footer
      %s22 = sadd.s32 1, %s18
    $region7: #{tpu_custom_call.1} parent=1 // loop_footer_branch
      %17 = sbr.rel target = $region3
    $region8: #{tpu_custom_call.1} parent=1 // loop_exit
      _
    %680 = vsyncpa [#allocation3], 1
    %s681 = scalar_lea.sflag [#allocation3], 1
    %682 = vsyncpa %s681, 1
    %683 = vsyncpa [#allocation6], 1
    %s684 = scalar_lea.sflag [#allocation6], 1
    %685 = vsyncpa %s684, 1
    %686 = vsyncpa [#allocation4], 1
    %s687 = scalar_lea.sflag [#allocation4], 1
    %688 = vsyncpa %s687, 1

</llo_original>
